<compile_context>
chip_gen: v5e
topology: v5e:2x2
jax: 0.10.0
libtpu: 0.0.40
codegen_flags: <defaults>
</compile_context>

<pallas_src>
import functools

import jax
import jax.numpy as jnp
from jax.experimental import pallas as pl
from jax.experimental.pallas import tpu as pltpu


# ----------------------------------------------------------------------------
# Pure-DMA gather kernel: one grid step per (batch element, sequence chunk).
#   chunk 0 additionally copies the precomputed (P, D) task prefix.
# ----------------------------------------------------------------------------
def _gather_kernel(seq_chunk, prefix_len, nsem,
                   ids_ref, lk_ref,          # scalar-prefetch SMEM refs
                   pfx_hbm, tok_hbm,         # HBM inputs (pl.ANY)
                   out_hbm,                  # HBM output (pl.ANY)
                   sems):                    # DMA semaphores, shape (nsem + 1,)
    bi = pl.program_id(0)          # batch element
    ci = pl.program_id(1)          # sequence chunk

    # --- task prefix: one (P, D) HBM->HBM copy, only for the first chunk -----
    @pl.when(ci == 0)
    def _start_prefix():
        pltpu.make_async_copy(
            pfx_hbm.at[lk_ref[bi]],                       # (P, D) precomputed prefix
            out_hbm.at[bi, pl.ds(0, prefix_len), :],      # rows [0, P) of this batch
            sems.at[nsem]).start()

    # --- token gather: one (1, D) HBM->HBM copy per token --------------------
    # At most `nsem` copies in flight: slot lr % nsem is freed (waited) before reuse.
    base = ci * seq_chunk
    copies = []
    for lr in range(seq_chunk):
        if lr >= nsem:
            copies[lr - nsem].wait()                      # free this slot
        tok_id = ids_ref[bi, base + lr]                   # scalar SMEM read
        cp = pltpu.make_async_copy(
            tok_hbm.at[pl.ds(tok_id, 1), :],              # (1, D) table row
            out_hbm.at[bi, pl.ds(prefix_len + base + lr, 1), :],
            sems.at[lr % nsem])
        cp.start()
        copies.append(cp)

    # Drain the tail of the pool.
    for lr in range(max(0, seq_chunk - nsem), seq_chunk):
        copies[lr].wait()

    @pl.when(ci == 0)
    def _wait_prefix():
        # Fresh descriptor with identical shape/sem: wait only needs the byte count.
        pltpu.make_async_copy(
            pfx_hbm.at[lk_ref[bi]],
            out_hbm.at[bi, pl.ds(0, prefix_len), :],
            sems.at[nsem]).wait()


# ----------------------------------------------------------------------------
# Wrapper: TaskEmbeddingModel.prepare_input semantics
# ----------------------------------------------------------------------------
def prepare_input(input_ids, attention_mask, task_ids,
                  tok_table, task_table, w_up, b_up,
                  num_tasks, prefix_length, internal_dim,
                  ensure_task_id=True, seq_chunk=256, nsem=8):
    batch, seq = input_ids.shape
    vocab, d = tok_table.shape
    out_dtype = tok_table.dtype

    # lookup = (task_ids < num_tasks) * task_ids  (out-of-range -> 0); clamp negatives
    # (which would crash PyTorch's nn.Embedding) so the DMA source is always in-bounds.
    if task_ids is None:
        if ensure_task_id:
            raise ValueError("Need task ids")
        lookup = jnp.zeros((batch,), jnp.int32)
    else:
        lookup = jnp.where(task_ids < num_tasks, task_ids, 0).astype(jnp.int32)
        lookup = jnp.clip(lookup, 0, num_tasks - 1)

    # Clamp token ids so the in-kernel DMA gather can never walk off the table.
    ids = jnp.clip(input_ids.astype(jnp.int32), 0, vocab - 1)

    # Precompute ALL projected task prefixes once (num_tasks * P rows; tiny) in plain
    # XLA; the hot kernel only gathers rows from this table.
    prefix_rep = (task_table.reshape(num_tasks * prefix_length, internal_dim)
                  @ w_up + b_up).astype(out_dtype)
    prefix_rep = prefix_rep.reshape(num_tasks, prefix_length, d)

    # Sequence chunking (second, parallel grid axis).  Fall back to a single chunk if
    # the requested chunk does not evenly divide the sequence.
    if seq_chunk <= 0 or seq < seq_chunk or seq % seq_chunk != 0:
        seq_chunk = seq
    num_chunks = seq // seq_chunk
    nsem = max(1, min(nsem, seq_chunk))

    out_rows = prefix_length + seq
    itemsize = jnp.dtype(out_dtype).itemsize
    bytes_accessed = int(itemsize * (batch * seq * d               # token-row reads
                                     + batch * prefix_length * d   # prefix reads
                                     + batch * out_rows * d))      # output writes

    kernel = functools.partial(_gather_kernel, seq_chunk, prefix_length, nsem)

    inputs_embeds = pl.pallas_call(
        kernel,
        out_shape=jax.ShapeDtypeStruct((batch, out_rows, d), out_dtype),
        grid_spec=pltpu.PrefetchScalarGridSpec(
            num_scalar_prefetch=2,             # ids [B, S], lookup [B] -> SMEM
            grid=(batch, num_chunks),
            in_specs=[
                pl.BlockSpec(memory_space=pl.ANY),   # prefix_rep [T, P, D] stays in HBM
                pl.BlockSpec(memory_space=pl.ANY),   # tok_table  [V, D]    stays in HBM
            ],
            out_specs=pl.BlockSpec(memory_space=pl.ANY),   # [B, P+S, D] written via DMA
            scratch_shapes=[pltpu.SemaphoreType.DMA((nsem + 1,))],
        ),
        compiler_params=pltpu.CompilerParams(
            dimension_semantics=("parallel", "parallel")),   # v7x: both TCs busy
        cost_estimate=pl.CostEstimate(flops=0, transcendentals=0,
                                      bytes_accessed=bytes_accessed),
    )(ids, lookup, prefix_rep, tok_table)

    new_mask = None
    if attention_mask is not None:
        ones = jnp.ones((batch, prefix_length), dtype=attention_mask.dtype)
        new_mask = jnp.concatenate([ones, attention_mask], axis=1)   # tiny glue op
    return inputs_embeds, new_mask


# ----------------------------------------------------------------------------
# Demo / correctness check
# ----------------------------------------------------------------------------
if __name__ == "__main__":
    # Small shapes; D multiple of 128 keeps rows lane-dense.  S=16 with seq_chunk=8
    # exercises the 2-chunk grid, and nsem=4 exercises semaphore-slot reuse.
    B, S = 2, 16
    VOCAB = 64
    D = 128                # embedding_dim of the wrapped model
    I = 32                 # internal_embedding_dim
    P = 4                  # prefix_length
    NUM_TASKS = 6

    key = jax.random.PRNGKey(0)
    k1, k2, k3, k4, k5 = jax.random.split(key, 5)

    # deterministic "parameters"
    tok_table = jax.random.normal(k1, (VOCAB, D), jnp.float32) * 0.02
    task_table = jax.random.normal(k2, (NUM_TASKS, P * I), jnp.float32) * 0.02
    w_up = jax.random.normal(k3, (I, D), jnp.float32) * 0.1    # Linear weight^T
    b_up = jax.random.normal(k4, (1, D), jnp.float32) * 0.01   # Linear bias

    # deterministic inputs (one out-of-range task id exercises the lookup clamp path)
    input_ids = jax.random.randint(k5, (B, S), 0, VOCAB, dtype=jnp.int32)
    task_ids = jnp.array([1, NUM_TASKS + 3], dtype=jnp.int32)
    attention_mask = jnp.ones((B, S), dtype=jnp.int32)

    inputs_embeds, new_mask = prepare_input(
        input_ids, attention_mask, task_ids,
        tok_table, task_table, w_up, b_up,
        NUM_TASKS, P, I,
        seq_chunk=8, nsem=4)
    jax.block_until_ready((inputs_embeds, new_mask))

    # pure-JAX reference
    ref_tok = tok_table[input_ids]                              # [B, S, D]
    lookup_ref = jnp.where(task_ids < NUM_TASKS, task_ids, 0)
    ref_rep = task_table[lookup_ref].reshape(B, P, I) @ w_up + b_up
    ref_embeds = jnp.concatenate([ref_rep, ref_tok], axis=1)
    ref_mask = jnp.concatenate(
        [jnp.ones((B, P), jnp.int32), attention_mask], axis=1)

    assert inputs_embeds.shape == (B, P + S, D)
    assert new_mask.shape == (B, P + S)
    assert jnp.allclose(inputs_embeds, ref_embeds, atol=1e-5, rtol=1e-5)
    assert jnp.array_equal(new_mask, ref_mask)

    print("KERNEL_OK")
</pallas_src>

<mosaic_0001>
module attributes {stable_mosaic.version = 11 : i64} {
  func.func @_gather_kernel(%arg0: i32, %arg1: i32, %arg2: memref<2x16xi32, #tpu.memory_space<smem>>, %arg3: memref<2xi32, #tpu.memory_space<smem>>, %arg4: memref<6x4x128xf32, #tpu.memory_space<any>>, %arg5: memref<64x128xf32, #tpu.memory_space<any>>, %arg6: memref<2x20x128xf32, #tpu.memory_space<any>>, %arg7: memref<5x!tpu.dma_semaphore, #tpu.memory_space<semaphore_mem>>) attributes {dimension_semantics = [#tpu.dimension_semantics<parallel>, #tpu.dimension_semantics<parallel>], iteration_bounds = array<i64: 2, 2>, scalar_prefetch = 2 : i64, scratch_operands = 1 : i64, tpu.core_type = #tpu.core_type<tc>, window_params = [{}, {}, {}]} {
    %c0_i32 = arith.constant 0 : i32
    %0 = arith.cmpi eq, %arg1, %c0_i32 : i32
    %1 = arith.extui %0 : i1 to i32
    %c0_i32_0 = arith.constant 0 : i32
    %2 = arith.cmpi ne, %1, %c0_i32_0 : i32
    scf.if %2 {
      %135 = arith.index_cast %arg0 : i32 to index
      %136 = memref.load %arg3[%135] : memref<2xi32, #tpu.memory_space<smem>>
      %c4_i32_68 = arith.constant 4 : i32
      %c0_i32_69 = arith.constant 0 : i32
      %c0_i32_70 = arith.constant 0 : i32
      %137 = tpu.memref_slice %arg4[%136, %c0_i32_69, %c0_i32_70] : memref<6x4x128xf32, #tpu.memory_space<any>> -> memref<1x4x128xf32, #tpu.memory_space<any>>
      %138 = tpu.memref_squeeze %137 : memref<1x4x128xf32, #tpu.memory_space<any>> -> memref<4x128xf32, #tpu.memory_space<any>>
      %c0_i32_71 = arith.constant 0 : i32
      %c0_i32_72 = arith.constant 0 : i32
      %139 = tpu.memref_slice %arg6[%arg0, %c0_i32_71, %c0_i32_72] : memref<2x20x128xf32, #tpu.memory_space<any>> -> memref<1x4x128xf32, #tpu.memory_space<any>>
      %140 = tpu.memref_squeeze %139 : memref<1x4x128xf32, #tpu.memory_space<any>> -> memref<4x128xf32, #tpu.memory_space<any>>
      %141 = tpu.memref_slice %arg7[%c4_i32_68] : memref<5x!tpu.dma_semaphore, #tpu.memory_space<semaphore_mem>> -> memref<1x!tpu.dma_semaphore, #tpu.memory_space<semaphore_mem>>
      %142 = tpu.memref_squeeze %141 : memref<1x!tpu.dma_semaphore, #tpu.memory_space<semaphore_mem>> -> memref<!tpu.dma_semaphore, #tpu.memory_space<semaphore_mem>>
      tpu.enqueue_dma source(%138 : memref<4x128xf32, #tpu.memory_space<any>>) target(%140 : memref<4x128xf32, #tpu.memory_space<any>>) target_semaphore(%142 : memref<!tpu.dma_semaphore, #tpu.memory_space<semaphore_mem>>)
    } else {
    }
    %c8_i32 = arith.constant 8 : i32
    %3 = arith.muli %arg1, %c8_i32 : i32
    %c0_i32_1 = arith.constant 0 : i32
    %4 = arith.addi %3, %c0_i32_1 : i32
    %5 = arith.index_cast %arg0 : i32 to index
    %6 = arith.index_cast %4 : i32 to index
    %7 = memref.load %arg2[%5, %6] : memref<2x16xi32, #tpu.memory_space<smem>>
    %c4_i32 = arith.constant 4 : i32
    %8 = arith.addi %c4_i32, %3 : i32
    %c0_i32_2 = arith.constant 0 : i32
    %9 = arith.addi %8, %c0_i32_2 : i32
    %c0_i32_3 = arith.constant 0 : i32
    %c0_i32_4 = arith.constant 0 : i32
    %10 = tpu.memref_slice %arg5[%7, %c0_i32_4] : memref<64x128xf32, #tpu.memory_space<any>> -> memref<1x128xf32, #tpu.memory_space<any>>
    %c0_i32_5 = arith.constant 0 : i32
    %11 = tpu.memref_slice %arg6[%arg0, %9, %c0_i32_5] : memref<2x20x128xf32, #tpu.memory_space<any>> -> memref<1x1x128xf32, #tpu.memory_space<any>>
    %12 = tpu.memref_squeeze %11 : memref<1x1x128xf32, #tpu.memory_space<any>> -> memref<1x128xf32, #tpu.memory_space<any>>
    %13 = tpu.memref_slice %arg7[%c0_i32_3] : memref<5x!tpu.dma_semaphore, #tpu.memory_space<semaphore_mem>> -> memref<1x!tpu.dma_semaphore, #tpu.memory_space<semaphore_mem>>
    %14 = tpu.memref_squeeze %13 : memref<1x!tpu.dma_semaphore, #tpu.memory_space<semaphore_mem>> -> memref<!tpu.dma_semaphore, #tpu.memory_space<semaphore_mem>>
    tpu.enqueue_dma source(%10 : memref<1x128xf32, #tpu.memory_space<any>>) target(%12 : memref<1x128xf32, #tpu.memory_space<any>>) target_semaphore(%14 : memref<!tpu.dma_semaphore, #tpu.memory_space<semaphore_mem>>)
    %c1_i32 = arith.constant 1 : i32
    %15 = arith.addi %3, %c1_i32 : i32
    %16 = arith.index_cast %arg0 : i32 to index
    %17 = arith.index_cast %15 : i32 to index
    %18 = memref.load %arg2[%16, %17] : memref<2x16xi32, #tpu.memory_space<smem>>
    %c4_i32_6 = arith.constant 4 : i32
    %19 = arith.addi %c4_i32_6, %3 : i32
    %c1_i32_7 = arith.constant 1 : i32
    %20 = arith.addi %19, %c1_i32_7 : i32
    %c1_i32_8 = arith.constant 1 : i32
    %c0_i32_9 = arith.constant 0 : i32
    %21 = tpu.memref_slice %arg5[%18, %c0_i32_9] : memref<64x128xf32, #tpu.memory_space<any>> -> memref<1x128xf32, #tpu.memory_space<any>>
    %c0_i32_10 = arith.constant 0 : i32
    %22 = tpu.memref_slice %arg6[%arg0, %20, %c0_i32_10] : memref<2x20x128xf32, #tpu.memory_space<any>> -> memref<1x1x128xf32, #tpu.memory_space<any>>
    %23 = tpu.memref_squeeze %22 : memref<1x1x128xf32, #tpu.memory_space<any>> -> memref<1x128xf32, #tpu.memory_space<any>>
    %24 = tpu.memref_slice %arg7[%c1_i32_8] : memref<5x!tpu.dma_semaphore, #tpu.memory_space<semaphore_mem>> -> memref<1x!tpu.dma_semaphore, #tpu.memory_space<semaphore_mem>>
    %25 = tpu.memref_squeeze %24 : memref<1x!tpu.dma_semaphore, #tpu.memory_space<semaphore_mem>> -> memref<!tpu.dma_semaphore, #tpu.memory_space<semaphore_mem>>
    tpu.enqueue_dma source(%21 : memref<1x128xf32, #tpu.memory_space<any>>) target(%23 : memref<1x128xf32, #tpu.memory_space<any>>) target_semaphore(%25 : memref<!tpu.dma_semaphore, #tpu.memory_space<semaphore_mem>>)
    %c2_i32 = arith.constant 2 : i32
    %26 = arith.addi %3, %c2_i32 : i32
    %27 = arith.index_cast %arg0 : i32 to index
    %28 = arith.index_cast %26 : i32 to index
    %29 = memref.load %arg2[%27, %28] : memref<2x16xi32, #tpu.memory_space<smem>>
    %c4_i32_11 = arith.constant 4 : i32
    %30 = arith.addi %c4_i32_11, %3 : i32
    %c2_i32_12 = arith.constant 2 : i32
    %31 = arith.addi %30, %c2_i32_12 : i32
    %c2_i32_13 = arith.constant 2 : i32
    %c0_i32_14 = arith.constant 0 : i32
    %32 = tpu.memref_slice %arg5[%29, %c0_i32_14] : memref<64x128xf32, #tpu.memory_space<any>> -> memref<1x128xf32, #tpu.memory_space<any>>
    %c0_i32_15 = arith.constant 0 : i32
    %33 = tpu.memref_slice %arg6[%arg0, %31, %c0_i32_15] : memref<2x20x128xf32, #tpu.memory_space<any>> -> memref<1x1x128xf32, #tpu.memory_space<any>>
    %34 = tpu.memref_squeeze %33 : memref<1x1x128xf32, #tpu.memory_space<any>> -> memref<1x128xf32, #tpu.memory_space<any>>
    %35 = tpu.memref_slice %arg7[%c2_i32_13] : memref<5x!tpu.dma_semaphore, #tpu.memory_space<semaphore_mem>> -> memref<1x!tpu.dma_semaphore, #tpu.memory_space<semaphore_mem>>
    %36 = tpu.memref_squeeze %35 : memref<1x!tpu.dma_semaphore, #tpu.memory_space<semaphore_mem>> -> memref<!tpu.dma_semaphore, #tpu.memory_space<semaphore_mem>>
    tpu.enqueue_dma source(%32 : memref<1x128xf32, #tpu.memory_space<any>>) target(%34 : memref<1x128xf32, #tpu.memory_space<any>>) target_semaphore(%36 : memref<!tpu.dma_semaphore, #tpu.memory_space<semaphore_mem>>)
    %c3_i32 = arith.constant 3 : i32
    %37 = arith.addi %3, %c3_i32 : i32
    %38 = arith.index_cast %arg0 : i32 to index
    %39 = arith.index_cast %37 : i32 to index
    %40 = memref.load %arg2[%38, %39] : memref<2x16xi32, #tpu.memory_space<smem>>
    %c4_i32_16 = arith.constant 4 : i32
    %41 = arith.addi %c4_i32_16, %3 : i32
    %c3_i32_17 = arith.constant 3 : i32
    %42 = arith.addi %41, %c3_i32_17 : i32
    %c3_i32_18 = arith.constant 3 : i32
    %c0_i32_19 = arith.constant 0 : i32
    %43 = tpu.memref_slice %arg5[%40, %c0_i32_19] : memref<64x128xf32, #tpu.memory_space<any>> -> memref<1x128xf32, #tpu.memory_space<any>>
    %c0_i32_20 = arith.constant 0 : i32
    %44 = tpu.memref_slice %arg6[%arg0, %42, %c0_i32_20] : memref<2x20x128xf32, #tpu.memory_space<any>> -> memref<1x1x128xf32, #tpu.memory_space<any>>
    %45 = tpu.memref_squeeze %44 : memref<1x1x128xf32, #tpu.memory_space<any>> -> memref<1x128xf32, #tpu.memory_space<any>>
    %46 = tpu.memref_slice %arg7[%c3_i32_18] : memref<5x!tpu.dma_semaphore, #tpu.memory_space<semaphore_mem>> -> memref<1x!tpu.dma_semaphore, #tpu.memory_space<semaphore_mem>>
    %47 = tpu.memref_squeeze %46 : memref<1x!tpu.dma_semaphore, #tpu.memory_space<semaphore_mem>> -> memref<!tpu.dma_semaphore, #tpu.memory_space<semaphore_mem>>
    tpu.enqueue_dma source(%43 : memref<1x128xf32, #tpu.memory_space<any>>) target(%45 : memref<1x128xf32, #tpu.memory_space<any>>) target_semaphore(%47 : memref<!tpu.dma_semaphore, #tpu.memory_space<semaphore_mem>>)
    %c0_i32_21 = arith.constant 0 : i32
    %c0_i32_22 = arith.constant 0 : i32
    %48 = tpu.memref_slice %arg5[%7, %c0_i32_22] : memref<64x128xf32, #tpu.memory_space<any>> -> memref<1x128xf32, #tpu.memory_space<any>>
    %c0_i32_23 = arith.constant 0 : i32
    %49 = tpu.memref_slice %arg6[%arg0, %9, %c0_i32_23] : memref<2x20x128xf32, #tpu.memory_space<any>> -> memref<1x1x128xf32, #tpu.memory_space<any>>
    %50 = tpu.memref_squeeze %49 : memref<1x1x128xf32, #tpu.memory_space<any>> -> memref<1x128xf32, #tpu.memory_space<any>>
    %51 = tpu.memref_slice %arg7[%c0_i32_21] : memref<5x!tpu.dma_semaphore, #tpu.memory_space<semaphore_mem>> -> memref<1x!tpu.dma_semaphore, #tpu.memory_space<semaphore_mem>>
    %52 = tpu.memref_squeeze %51 : memref<1x!tpu.dma_semaphore, #tpu.memory_space<semaphore_mem>> -> memref<!tpu.dma_semaphore, #tpu.memory_space<semaphore_mem>>
    tpu.wait_dma2 semaphore(%52 : memref<!tpu.dma_semaphore, #tpu.memory_space<semaphore_mem>>) src(%48 : memref<1x128xf32, #tpu.memory_space<any>>) dst(%50 : memref<1x128xf32, #tpu.memory_space<any>>)
    %c4_i32_24 = arith.constant 4 : i32
    %53 = arith.addi %3, %c4_i32_24 : i32
    %54 = arith.index_cast %arg0 : i32 to index
    %55 = arith.index_cast %53 : i32 to index
    %56 = memref.load %arg2[%54, %55] : memref<2x16xi32, #tpu.memory_space<smem>>
    %c4_i32_25 = arith.constant 4 : i32
    %57 = arith.addi %c4_i32_25, %3 : i32
    %c4_i32_26 = arith.constant 4 : i32
    %58 = arith.addi %57, %c4_i32_26 : i32
    %c0_i32_27 = arith.constant 0 : i32
    %c0_i32_28 = arith.constant 0 : i32
    %59 = tpu.memref_slice %arg5[%56, %c0_i32_28] : memref<64x128xf32, #tpu.memory_space<any>> -> memref<1x128xf32, #tpu.memory_space<any>>
    %c0_i32_29 = arith.constant 0 : i32
    %60 = tpu.memref_slice %arg6[%arg0, %58, %c0_i32_29] : memref<2x20x128xf32, #tpu.memory_space<any>> -> memref<1x1x128xf32, #tpu.memory_space<any>>
    %61 = tpu.memref_squeeze %60 : memref<1x1x128xf32, #tpu.memory_space<any>> -> memref<1x128xf32, #tpu.memory_space<any>>
    %62 = tpu.memref_slice %arg7[%c0_i32_27] : memref<5x!tpu.dma_semaphore, #tpu.memory_space<semaphore_mem>> -> memref<1x!tpu.dma_semaphore, #tpu.memory_space<semaphore_mem>>
    %63 = tpu.memref_squeeze %62 : memref<1x!tpu.dma_semaphore, #tpu.memory_space<semaphore_mem>> -> memref<!tpu.dma_semaphore, #tpu.memory_space<semaphore_mem>>
    tpu.enqueue_dma source(%59 : memref<1x128xf32, #tpu.memory_space<any>>) target(%61 : memref<1x128xf32, #tpu.memory_space<any>>) target_semaphore(%63 : memref<!tpu.dma_semaphore, #tpu.memory_space<semaphore_mem>>)
    %c1_i32_30 = arith.constant 1 : i32
    %c0_i32_31 = arith.constant 0 : i32
    %64 = tpu.memref_slice %arg5[%18, %c0_i32_31] : memref<64x128xf32, #tpu.memory_space<any>> -> memref<1x128xf32, #tpu.memory_space<any>>
    %c0_i32_32 = arith.constant 0 : i32
    %65 = tpu.memref_slice %arg6[%arg0, %20, %c0_i32_32] : memref<2x20x128xf32, #tpu.memory_space<any>> -> memref<1x1x128xf32, #tpu.memory_space<any>>
    %66 = tpu.memref_squeeze %65 : memref<1x1x128xf32, #tpu.memory_space<any>> -> memref<1x128xf32, #tpu.memory_space<any>>
    %67 = tpu.memref_slice %arg7[%c1_i32_30] : memref<5x!tpu.dma_semaphore, #tpu.memory_space<semaphore_mem>> -> memref<1x!tpu.dma_semaphore, #tpu.memory_space<semaphore_mem>>
    %68 = tpu.memref_squeeze %67 : memref<1x!tpu.dma_semaphore, #tpu.memory_space<semaphore_mem>> -> memref<!tpu.dma_semaphore, #tpu.memory_space<semaphore_mem>>
    tpu.wait_dma2 semaphore(%68 : memref<!tpu.dma_semaphore, #tpu.memory_space<semaphore_mem>>) src(%64 : memref<1x128xf32, #tpu.memory_space<any>>) dst(%66 : memref<1x128xf32, #tpu.memory_space<any>>)
    %c5_i32 = arith.constant 5 : i32
    %69 = arith.addi %3, %c5_i32 : i32
    %70 = arith.index_cast %arg0 : i32 to index
    %71 = arith.index_cast %69 : i32 to index
    %72 = memref.load %arg2[%70, %71] : memref<2x16xi32, #tpu.memory_space<smem>>
    %c4_i32_33 = arith.constant 4 : i32
    %73 = arith.addi %c4_i32_33, %3 : i32
    %c5_i32_34 = arith.constant 5 : i32
    %74 = arith.addi %73, %c5_i32_34 : i32
    %c1_i32_35 = arith.constant 1 : i32
    %c0_i32_36 = arith.constant 0 : i32
    %75 = tpu.memref_slice %arg5[%72, %c0_i32_36] : memref<64x128xf32, #tpu.memory_space<any>> -> memref<1x128xf32, #tpu.memory_space<any>>
    %c0_i32_37 = arith.constant 0 : i32
    %76 = tpu.memref_slice %arg6[%arg0, %74, %c0_i32_37] : memref<2x20x128xf32, #tpu.memory_space<any>> -> memref<1x1x128xf32, #tpu.memory_space<any>>
    %77 = tpu.memref_squeeze %76 : memref<1x1x128xf32, #tpu.memory_space<any>> -> memref<1x128xf32, #tpu.memory_space<any>>
    %78 = tpu.memref_slice %arg7[%c1_i32_35] : memref<5x!tpu.dma_semaphore, #tpu.memory_space<semaphore_mem>> -> memref<1x!tpu.dma_semaphore, #tpu.memory_space<semaphore_mem>>
    %79 = tpu.memref_squeeze %78 : memref<1x!tpu.dma_semaphore, #tpu.memory_space<semaphore_mem>> -> memref<!tpu.dma_semaphore, #tpu.memory_space<semaphore_mem>>
    tpu.enqueue_dma source(%75 : memref<1x128xf32, #tpu.memory_space<any>>) target(%77 : memref<1x128xf32, #tpu.memory_space<any>>) target_semaphore(%79 : memref<!tpu.dma_semaphore, #tpu.memory_space<semaphore_mem>>)
    %c2_i32_38 = arith.constant 2 : i32
    %c0_i32_39 = arith.constant 0 : i32
    %80 = tpu.memref_slice %arg5[%29, %c0_i32_39] : memref<64x128xf32, #tpu.memory_space<any>> -> memref<1x128xf32, #tpu.memory_space<any>>
    %c0_i32_40 = arith.constant 0 : i32
    %81 = tpu.memref_slice %arg6[%arg0, %31, %c0_i32_40] : memref<2x20x128xf32, #tpu.memory_space<any>> -> memref<1x1x128xf32, #tpu.memory_space<any>>
    %82 = tpu.memref_squeeze %81 : memref<1x1x128xf32, #tpu.memory_space<any>> -> memref<1x128xf32, #tpu.memory_space<any>>
    %83 = tpu.memref_slice %arg7[%c2_i32_38] : memref<5x!tpu.dma_semaphore, #tpu.memory_space<semaphore_mem>> -> memref<1x!tpu.dma_semaphore, #tpu.memory_space<semaphore_mem>>
    %84 = tpu.memref_squeeze %83 : memref<1x!tpu.dma_semaphore, #tpu.memory_space<semaphore_mem>> -> memref<!tpu.dma_semaphore, #tpu.memory_space<semaphore_mem>>
    tpu.wait_dma2 semaphore(%84 : memref<!tpu.dma_semaphore, #tpu.memory_space<semaphore_mem>>) src(%80 : memref<1x128xf32, #tpu.memory_space<any>>) dst(%82 : memref<1x128xf32, #tpu.memory_space<any>>)
    %c6_i32 = arith.constant 6 : i32
    %85 = arith.addi %3, %c6_i32 : i32
    %86 = arith.index_cast %arg0 : i32 to index
    %87 = arith.index_cast %85 : i32 to index
    %88 = memref.load %arg2[%86, %87] : memref<2x16xi32, #tpu.memory_space<smem>>
    %c4_i32_41 = arith.constant 4 : i32
    %89 = arith.addi %c4_i32_41, %3 : i32
    %c6_i32_42 = arith.constant 6 : i32
    %90 = arith.addi %89, %c6_i32_42 : i32
    %c2_i32_43 = arith.constant 2 : i32
    %c0_i32_44 = arith.constant 0 : i32
    %91 = tpu.memref_slice %arg5[%88, %c0_i32_44] : memref<64x128xf32, #tpu.memory_space<any>> -> memref<1x128xf32, #tpu.memory_space<any>>
    %c0_i32_45 = arith.constant 0 : i32
    %92 = tpu.memref_slice %arg6[%arg0, %90, %c0_i32_45] : memref<2x20x128xf32, #tpu.memory_space<any>> -> memref<1x1x128xf32, #tpu.memory_space<any>>
    %93 = tpu.memref_squeeze %92 : memref<1x1x128xf32, #tpu.memory_space<any>> -> memref<1x128xf32, #tpu.memory_space<any>>
    %94 = tpu.memref_slice %arg7[%c2_i32_43] : memref<5x!tpu.dma_semaphore, #tpu.memory_space<semaphore_mem>> -> memref<1x!tpu.dma_semaphore, #tpu.memory_space<semaphore_mem>>
    %95 = tpu.memref_squeeze %94 : memref<1x!tpu.dma_semaphore, #tpu.memory_space<semaphore_mem>> -> memref<!tpu.dma_semaphore, #tpu.memory_space<semaphore_mem>>
    tpu.enqueue_dma source(%91 : memref<1x128xf32, #tpu.memory_space<any>>) target(%93 : memref<1x128xf32, #tpu.memory_space<any>>) target_semaphore(%95 : memref<!tpu.dma_semaphore, #tpu.memory_space<semaphore_mem>>)
    %c3_i32_46 = arith.constant 3 : i32
    %c0_i32_47 = arith.constant 0 : i32
    %96 = tpu.memref_slice %arg5[%40, %c0_i32_47] : memref<64x128xf32, #tpu.memory_space<any>> -> memref<1x128xf32, #tpu.memory_space<any>>
    %c0_i32_48 = arith.constant 0 : i32
    %97 = tpu.memref_slice %arg6[%arg0, %42, %c0_i32_48] : memref<2x20x128xf32, #tpu.memory_space<any>> -> memref<1x1x128xf32, #tpu.memory_space<any>>
    %98 = tpu.memref_squeeze %97 : memref<1x1x128xf32, #tpu.memory_space<any>> -> memref<1x128xf32, #tpu.memory_space<any>>
    %99 = tpu.memref_slice %arg7[%c3_i32_46] : memref<5x!tpu.dma_semaphore, #tpu.memory_space<semaphore_mem>> -> memref<1x!tpu.dma_semaphore, #tpu.memory_space<semaphore_mem>>
    %100 = tpu.memref_squeeze %99 : memref<1x!tpu.dma_semaphore, #tpu.memory_space<semaphore_mem>> -> memref<!tpu.dma_semaphore, #tpu.memory_space<semaphore_mem>>
    tpu.wait_dma2 semaphore(%100 : memref<!tpu.dma_semaphore, #tpu.memory_space<semaphore_mem>>) src(%96 : memref<1x128xf32, #tpu.memory_space<any>>) dst(%98 : memref<1x128xf32, #tpu.memory_space<any>>)
    %c7_i32 = arith.constant 7 : i32
    %101 = arith.addi %3, %c7_i32 : i32
    %102 = arith.index_cast %arg0 : i32 to index
    %103 = arith.index_cast %101 : i32 to index
    %104 = memref.load %arg2[%102, %103] : memref<2x16xi32, #tpu.memory_space<smem>>
    %c4_i32_49 = arith.constant 4 : i32
    %105 = arith.addi %c4_i32_49, %3 : i32
    %c7_i32_50 = arith.constant 7 : i32
    %106 = arith.addi %105, %c7_i32_50 : i32
    %c3_i32_51 = arith.constant 3 : i32
    %c0_i32_52 = arith.constant 0 : i32
    %107 = tpu.memref_slice %arg5[%104, %c0_i32_52] : memref<64x128xf32, #tpu.memory_space<any>> -> memref<1x128xf32, #tpu.memory_space<any>>
    %c0_i32_53 = arith.constant 0 : i32
    %108 = tpu.memref_slice %arg6[%arg0, %106, %c0_i32_53] : memref<2x20x128xf32, #tpu.memory_space<any>> -> memref<1x1x128xf32, #tpu.memory_space<any>>
    %109 = tpu.memref_squeeze %108 : memref<1x1x128xf32, #tpu.memory_space<any>> -> memref<1x128xf32, #tpu.memory_space<any>>
    %110 = tpu.memref_slice %arg7[%c3_i32_51] : memref<5x!tpu.dma_semaphore, #tpu.memory_space<semaphore_mem>> -> memref<1x!tpu.dma_semaphore, #tpu.memory_space<semaphore_mem>>
    %111 = tpu.memref_squeeze %110 : memref<1x!tpu.dma_semaphore, #tpu.memory_space<semaphore_mem>> -> memref<!tpu.dma_semaphore, #tpu.memory_space<semaphore_mem>>
    tpu.enqueue_dma source(%107 : memref<1x128xf32, #tpu.memory_space<any>>) target(%109 : memref<1x128xf32, #tpu.memory_space<any>>) target_semaphore(%111 : memref<!tpu.dma_semaphore, #tpu.memory_space<semaphore_mem>>)
    %c0_i32_54 = arith.constant 0 : i32
    %c0_i32_55 = arith.constant 0 : i32
    %112 = tpu.memref_slice %arg5[%56, %c0_i32_55] : memref<64x128xf32, #tpu.memory_space<any>> -> memref<1x128xf32, #tpu.memory_space<any>>
    %c0_i32_56 = arith.constant 0 : i32
    %113 = tpu.memref_slice %arg6[%arg0, %58, %c0_i32_56] : memref<2x20x128xf32, #tpu.memory_space<any>> -> memref<1x1x128xf32, #tpu.memory_space<any>>
    %114 = tpu.memref_squeeze %113 : memref<1x1x128xf32, #tpu.memory_space<any>> -> memref<1x128xf32, #tpu.memory_space<any>>
    %115 = tpu.memref_slice %arg7[%c0_i32_54] : memref<5x!tpu.dma_semaphore, #tpu.memory_space<semaphore_mem>> -> memref<1x!tpu.dma_semaphore, #tpu.memory_space<semaphore_mem>>
    %116 = tpu.memref_squeeze %115 : memref<1x!tpu.dma_semaphore, #tpu.memory_space<semaphore_mem>> -> memref<!tpu.dma_semaphore, #tpu.memory_space<semaphore_mem>>
    tpu.wait_dma2 semaphore(%116 : memref<!tpu.dma_semaphore, #tpu.memory_space<semaphore_mem>>) src(%112 : memref<1x128xf32, #tpu.memory_space<any>>) dst(%114 : memref<1x128xf32, #tpu.memory_space<any>>)
    %c1_i32_57 = arith.constant 1 : i32
    %c0_i32_58 = arith.constant 0 : i32
    %117 = tpu.memref_slice %arg5[%72, %c0_i32_58] : memref<64x128xf32, #tpu.memory_space<any>> -> memref<1x128xf32, #tpu.memory_space<any>>
    %c0_i32_59 = arith.constant 0 : i32
    %118 = tpu.memref_slice %arg6[%arg0, %74, %c0_i32_59] : memref<2x20x128xf32, #tpu.memory_space<any>> -> memref<1x1x128xf32, #tpu.memory_space<any>>
    %119 = tpu.memref_squeeze %118 : memref<1x1x128xf32, #tpu.memory_space<any>> -> memref<1x128xf32, #tpu.memory_space<any>>
    %120 = tpu.memref_slice %arg7[%c1_i32_57] : memref<5x!tpu.dma_semaphore, #tpu.memory_space<semaphore_mem>> -> memref<1x!tpu.dma_semaphore, #tpu.memory_space<semaphore_mem>>
    %121 = tpu.memref_squeeze %120 : memref<1x!tpu.dma_semaphore, #tpu.memory_space<semaphore_mem>> -> memref<!tpu.dma_semaphore, #tpu.memory_space<semaphore_mem>>
    tpu.wait_dma2 semaphore(%121 : memref<!tpu.dma_semaphore, #tpu.memory_space<semaphore_mem>>) src(%117 : memref<1x128xf32, #tpu.memory_space<any>>) dst(%119 : memref<1x128xf32, #tpu.memory_space<any>>)
    %c2_i32_60 = arith.constant 2 : i32
    %c0_i32_61 = arith.constant 0 : i32
    %122 = tpu.memref_slice %arg5[%88, %c0_i32_61] : memref<64x128xf32, #tpu.memory_space<any>> -> memref<1x128xf32, #tpu.memory_space<any>>
    %c0_i32_62 = arith.constant 0 : i32
    %123 = tpu.memref_slice %arg6[%arg0, %90, %c0_i32_62] : memref<2x20x128xf32, #tpu.memory_space<any>> -> memref<1x1x128xf32, #tpu.memory_space<any>>
    %124 = tpu.memref_squeeze %123 : memref<1x1x128xf32, #tpu.memory_space<any>> -> memref<1x128xf32, #tpu.memory_space<any>>
    %125 = tpu.memref_slice %arg7[%c2_i32_60] : memref<5x!tpu.dma_semaphore, #tpu.memory_space<semaphore_mem>> -> memref<1x!tpu.dma_semaphore, #tpu.memory_space<semaphore_mem>>
    %126 = tpu.memref_squeeze %125 : memref<1x!tpu.dma_semaphore, #tpu.memory_space<semaphore_mem>> -> memref<!tpu.dma_semaphore, #tpu.memory_space<semaphore_mem>>
    tpu.wait_dma2 semaphore(%126 : memref<!tpu.dma_semaphore, #tpu.memory_space<semaphore_mem>>) src(%122 : memref<1x128xf32, #tpu.memory_space<any>>) dst(%124 : memref<1x128xf32, #tpu.memory_space<any>>)
    %c3_i32_63 = arith.constant 3 : i32
    %c0_i32_64 = arith.constant 0 : i32
    %127 = tpu.memref_slice %arg5[%104, %c0_i32_64] : memref<64x128xf32, #tpu.memory_space<any>> -> memref<1x128xf32, #tpu.memory_space<any>>
    %c0_i32_65 = arith.constant 0 : i32
    %128 = tpu.memref_slice %arg6[%arg0, %106, %c0_i32_65] : memref<2x20x128xf32, #tpu.memory_space<any>> -> memref<1x1x128xf32, #tpu.memory_space<any>>
    %129 = tpu.memref_squeeze %128 : memref<1x1x128xf32, #tpu.memory_space<any>> -> memref<1x128xf32, #tpu.memory_space<any>>
    %130 = tpu.memref_slice %arg7[%c3_i32_63] : memref<5x!tpu.dma_semaphore, #tpu.memory_space<semaphore_mem>> -> memref<1x!tpu.dma_semaphore, #tpu.memory_space<semaphore_mem>>
    %131 = tpu.memref_squeeze %130 : memref<1x!tpu.dma_semaphore, #tpu.memory_space<semaphore_mem>> -> memref<!tpu.dma_semaphore, #tpu.memory_space<semaphore_mem>>
    tpu.wait_dma2 semaphore(%131 : memref<!tpu.dma_semaphore, #tpu.memory_space<semaphore_mem>>) src(%127 : memref<1x128xf32, #tpu.memory_space<any>>) dst(%129 : memref<1x128xf32, #tpu.memory_space<any>>)
    %c0_i32_66 = arith.constant 0 : i32
    %132 = arith.cmpi eq, %arg1, %c0_i32_66 : i32
    %133 = arith.extui %132 : i1 to i32
    %c0_i32_67 = arith.constant 0 : i32
    %134 = arith.cmpi ne, %133, %c0_i32_67 : i32
    scf.if %134 {
      %135 = arith.index_cast %arg0 : i32 to index
      %136 = memref.load %arg3[%135] : memref<2xi32, #tpu.memory_space<smem>>
      %c4_i32_68 = arith.constant 4 : i32
      %c0_i32_69 = arith.constant 0 : i32
      %c0_i32_70 = arith.constant 0 : i32
      %137 = tpu.memref_slice %arg4[%136, %c0_i32_69, %c0_i32_70] : memref<6x4x128xf32, #tpu.memory_space<any>> -> memref<1x4x128xf32, #tpu.memory_space<any>>
      %138 = tpu.memref_squeeze %137 : memref<1x4x128xf32, #tpu.memory_space<any>> -> memref<4x128xf32, #tpu.memory_space<any>>
      %c0_i32_71 = arith.constant 0 : i32
      %c0_i32_72 = arith.constant 0 : i32
      %139 = tpu.memref_slice %arg6[%arg0, %c0_i32_71, %c0_i32_72] : memref<2x20x128xf32, #tpu.memory_space<any>> -> memref<1x4x128xf32, #tpu.memory_space<any>>
      %140 = tpu.memref_squeeze %139 : memref<1x4x128xf32, #tpu.memory_space<any>> -> memref<4x128xf32, #tpu.memory_space<any>>
      %141 = tpu.memref_slice %arg7[%c4_i32_68] : memref<5x!tpu.dma_semaphore, #tpu.memory_space<semaphore_mem>> -> memref<1x!tpu.dma_semaphore, #tpu.memory_space<semaphore_mem>>
      %142 = tpu.memref_squeeze %141 : memref<1x!tpu.dma_semaphore, #tpu.memory_space<semaphore_mem>> -> memref<!tpu.dma_semaphore, #tpu.memory_space<semaphore_mem>>
      tpu.wait_dma2 semaphore(%142 : memref<!tpu.dma_semaphore, #tpu.memory_space<semaphore_mem>>) src(%138 : memref<4x128xf32, #tpu.memory_space<any>>) dst(%140 : memref<4x128xf32, #tpu.memory_space<any>>)
    } else {
    }
    return
  }
}

</mosaic_0001>

<llo_original>
// kernel: tpu_custom_call.1
$region0: #{tpu_custom_call.1}
  #allocation0 [shape = 'u32[]', space=smem, size = 0x4, offset = 0x4, fixed_abs, tag = 'smem constant byte address 0x4 - core index']
  #allocation1 [shape = 'u32[72,128]{1,0:T(1,128)}', space=vmem, size = 0x9000, scoped, tag = 'internal scratch']
  #allocation2 [shape = 's32[5]{0}', space=sflag, size = 0x14, scoped, tag = 'scratch operand']
  #allocation3 [shape = 's32[1]{0}', space=sflag, size = 0x4, scoped, tag = 'scoped memory for tpu_custom_call.1']
  #allocation4 [shape = 'u8[1024]{0}', space=smem, size = 0x400, scoped, tag = 'prefetched SMEM operand 0']
  #allocation5 [shape = 'u8[512]{0}', space=smem, size = 0x200, scoped, tag = 'prefetched SMEM operand 1']
  #allocation6 [shape = 's32[]', space=sflag, size = 0x4, offset = 0, fixed_abs, tag = 'sflag constant byte address 0x0 - dummy sync flag']
  #allocation7 [shape = 's32[]', space=sflag, size = 0x4, offset = 0, fixed_abs, tag = 'sflag constant byte address 0x0 - dummy sync flag']
  #allocation8 [shape = 'u32[]', space=smem, size = 0x4, offset = 0x44, fixed_abs, tag = 'smem constant byte address 0x44 - assertion arg 0']
  #allocation9 [shape = 'u32[]', space=smem, size = 0x4, offset = 0x48, fixed_abs, tag = 'smem constant byte address 0x48 - assertion arg 1']
  #allocation10 [shape = 's32[]', space=sflag, size = 0x4, offset = 0, fixed_abs, tag = 'sflag constant byte address 0x0 - dummy sync flag']
  #allocation11 [shape = 's32[]', space=sflag, size = 0x4, offset = 0, fixed_abs, tag = 'sflag constant byte address 0x0 - dummy sync flag']
  #allocation12 [shape = 's32[]', space=sflag, size = 0x4, offset = 0, fixed_abs, tag = 'sflag constant byte address 0x0 - dummy sync flag']
  #allocation13 [shape = 's32[]', space=sflag, size = 0x4, offset = 0, fixed_abs, tag = 'sflag constant byte address 0x0 - dummy sync flag']
  #allocation14 [shape = 's32[]', space=sflag, size = 0x4, offset = 0, fixed_abs, tag = 'sflag constant byte address 0x0 - dummy sync flag']
  #allocation15 [shape = 's32[]', space=sflag, size = 0x4, offset = 0, fixed_abs, tag = 'sflag constant byte address 0x0 - dummy sync flag']
  #allocation16 [shape = 's32[]', space=sflag, size = 0x4, offset = 0, fixed_abs, tag = 'sflag constant byte address 0x0 - dummy sync flag']
  #allocation17 [shape = 's32[]', space=sflag, size = 0x4, offset = 0, fixed_abs, tag = 'sflag constant byte address 0x0 - dummy sync flag']
  #allocation18 [shape = 's32[]', space=sflag, size = 0x4, offset = 0, fixed_abs, tag = 'sflag constant byte address 0x0 - dummy sync flag']
  #allocation19 [shape = 's32[]', space=sflag, size = 0x4, offset = 0, fixed_abs, tag = 'sflag constant byte address 0x0 - dummy sync flag']
  #allocation20 [shape = 's32[]', space=sflag, size = 0x4, offset = 0, fixed_abs, tag = 'sflag constant byte address 0x0 - dummy sync flag']
  #allocation21 [shape = 's32[]', space=sflag, size = 0x4, offset = 0, fixed_abs, tag = 'sflag constant byte address 0x0 - dummy sync flag']
  #allocation22 [shape = 's32[]', space=sflag, size = 0x4, offset = 0, fixed_abs, tag = 'sflag constant byte address 0x0 - dummy sync flag']
  #allocation23 [shape = 's32[]', space=sflag, size = 0x4, offset = 0, fixed_abs, tag = 'sflag constant byte address 0x0 - dummy sync flag']
  #allocation24 [shape = 's32[]', space=sflag, size = 0x4, offset = 0, fixed_abs, tag = 'sflag constant byte address 0x0 - dummy sync flag']
  #allocation25 [shape = 's32[]', space=sflag, size = 0x4, offset = 0, fixed_abs, tag = 'sflag constant byte address 0x0 - dummy sync flag']
  %s0 = inlined_call_operand.hbm [shape: s32[2,16], index: 0, kind: input, shape index: {}]
  %s1 = inlined_call_operand.hbm [shape: s32[2], index: 1, kind: input, shape index: {}]
  %s2 = inlined_call_operand.hbm [shape: f32[6,4,128], index: 2, kind: input, shape index: {}]
  %s3 = inlined_call_operand.hbm [shape: f32[64,128], index: 3, kind: input, shape index: {}]
  %s4 = inlined_call_operand.vmem [shape: f32[2,20,128], index: 4, kind: output, shape index: {}]
  %s5 = sld [smem:[#allocation0]]
  $region53: #{tpu_custom_call.1} parent=0
    _
  %s7 = ssub.s32 1, %s5
  %s8 = scalar_select 0, %s7, %s5
  %s10 = sshll.u32 %s0, 4
  %s11 = int_to_ptr.hbm [resolvable:$true] %s10
  %13 = dma.hbm_to_smem %s11, 32, [#allocation4], [#allocation3]
  %s15 = sshll.u32 %s1, 4
  %s16 = int_to_ptr.hbm [resolvable:$true] %s15
  %18 = dma.hbm_to_smem %s16, 16, [#allocation5], [#allocation3]
  %20 = dma.done [#allocation3], 48
  %21 = sfence
  loop: start=0, step=1, limit=4
  $region2: #{tpu_custom_call.1} parent=0 // loop_pre_header
    _
  $region3: #{tpu_custom_call.1} parent=0 // loop_header
    %s23 = sphi 0, %s27
    %p24 = scmp.ge.s32.totalorder %s23, 4
    %s28 = sphi 0, %s36
    %s29 = sphi 0, %s32
  $region4: #{tpu_custom_call.1} parent=0 // loop_header_branch
    %26 = sbr.rel (%p24) target = $region8
  $region5: #{tpu_custom_call.1} parent=0 // loop_body
    %s30 = sadd.s32 1, %s29
    %p31 = scmp.ge.s32.totalorder %s30, 2
    %s32 = scalar_select %p31, 0, %s30
    %s33 = sadd.s32 1, %s28
    %s34 = scalar_select %p31, %s33, %s28
    %p35 = scmp.ge.s32.totalorder %s34, 2
    %s36 = scalar_select %p35, 0, %s34
    %p37 = scmp.eq.s32.totalorder %s29, 0
    // Predicated region
    $region9: #{tpu_custom_call.1} parent=5 // pred_check
      %p38 = pneg %p37
    $region10: #{tpu_custom_call.1} parent=5 // pred_check_branch
      %40 = sbr.rel (%p38) target = $region12
    $region11: #{tpu_custom_call.1} parent=5 // pred_region
      %s41 = sld [smem:[#allocation5 + %s28]]
      %s42 = smul.u32 %s41, 4
      %s43 = scalar_lea.hbm %s2, %s42
      %s44 = smul.u32 %s28, 24
      %s45 = scalar_lea.vmem %s4, %s44
      %s46 = scalar_lea.sflag [#allocation2], 4
      // Predicated region
      $region13: #{tpu_custom_call.1} parent=11 // pred_check
        _
      $region14: #{tpu_custom_call.1} parent=11 // pred_check_branch
        %48 = sbr.rel target = $region16
      $region15: #{tpu_custom_call.1} parent=11 // pred_region
        %49 = sst [smem:[#allocation8]] [#allocation7]
        %50 = sst [smem:[#allocation9]] [#allocation6]
      $region16: #{tpu_custom_call.1} parent=11 // pred_fallthru
        _
      %52 = shalt.err (0)
      %s54 = sshll.u32 %s43, 4
      %s55 = int_to_ptr.hbm [resolvable:$true] %s54
      %s56 = sshll.u32 %s45, 4
      %s57 = int_to_ptr.vmem [resolvable:$true] %s56
      %59 = dma.hbm_to_vmem [thread:$0]  %s55, 64, %s57, %s46
    $region12: #{tpu_custom_call.1} parent=5 // pred_fallthru
      _
    %s60 = smul.u32 %s29, 8
    %s61 = sshra.s32 %s60, 7
    %s62 = sand.u32 %s60, 127
    %s63 = sadd.s32 %s61, %s28
    %s64 = smul.u32 %s63, 128
    %s65 = sshra.s32 %s60, 7
    %s66 = sand.u32 %s60, 127
    %s67 = sadd.s32 %s64, %s66
    %s68 = sld [smem:[#allocation4 + %s67]]
    %s69 = sadd.s32 %s60, 4
    %s70 = scalar_lea.hbm %s3, %s68
    %s71 = smul.u32 %s28, 24
    %s72 = sadd.s32 %s69, %s71
    %s73 = scalar_lea.vmem %s4, %s72
    // Predicated region
    $region17: #{tpu_custom_call.1} parent=5 // pred_check
      _
    $region18: #{tpu_custom_call.1} parent=5 // pred_check_branch
      %75 = sbr.rel target = $region20
    $region19: #{tpu_custom_call.1} parent=5 // pred_region
      %76 = sst [smem:[#allocation8]] [#allocation11]
      %77 = sst [smem:[#allocation9]] [#allocation10]
    $region20: #{tpu_custom_call.1} parent=5 // pred_fallthru
      _
    %79 = shalt.err (0)
    %s81 = sshll.u32 %s70, 4
    %s82 = int_to_ptr.hbm [resolvable:$true] %s81
    %s83 = sshll.u32 %s73, 4
    %s84 = int_to_ptr.vmem [resolvable:$true] %s83
    %86 = dma.hbm_to_vmem [thread:$0]  %s82, 16, %s84, [#allocation2]
    %s87 = sadd.s32 %s60, 1
    %s88 = sshra.s32 %s87, 7
    %s89 = sand.u32 %s87, 127
    %s90 = sadd.s32 %s88, %s28
    %s91 = smul.u32 %s90, 128
    %s92 = sshra.s32 %s87, 7
    %s93 = sand.u32 %s87, 127
    %s94 = sadd.s32 %s91, %s93
    %s95 = sld [smem:[#allocation4 + %s94]]
    %s96 = sadd.s32 %s60, 5
    %s97 = scalar_lea.hbm %s3, %s95
    %s98 = sadd.s32 %s96, %s71
    %s99 = scalar_lea.vmem %s4, %s98
    %s100 = scalar_lea.sflag [#allocation2], 1
    // Predicated region
    $region21: #{tpu_custom_call.1} parent=5 // pred_check
      _
    $region22: #{tpu_custom_call.1} parent=5 // pred_check_branch
      %102 = sbr.rel target = $region24
    $region23: #{tpu_custom_call.1} parent=5 // pred_region
      %103 = sst [smem:[#allocation8]] [#allocation13]
      %104 = sst [smem:[#allocation9]] [#allocation12]
    $region24: #{tpu_custom_call.1} parent=5 // pred_fallthru
      _
    %106 = shalt.err (0)
    %s108 = sshll.u32 %s97, 4
    %s109 = int_to_ptr.hbm [resolvable:$true] %s108
    %s110 = sshll.u32 %s99, 4
    %s111 = int_to_ptr.vmem [resolvable:$true] %s110
    %113 = dma.hbm_to_vmem [thread:$0]  %s109, 16, %s111, %s100
    %s114 = sadd.s32 %s60, 2
    %s115 = sshra.s32 %s114, 7
    %s116 = sand.u32 %s114, 127
    %s117 = sadd.s32 %s115, %s28
    %s118 = smul.u32 %s117, 128
    %s119 = sshra.s32 %s114, 7
    %s120 = sand.u32 %s114, 127
    %s121 = sadd.s32 %s118, %s120
    %s122 = sld [smem:[#allocation4 + %s121]]
    %s123 = sadd.s32 %s60, 6
    %s124 = scalar_lea.hbm %s3, %s122
    %s125 = sadd.s32 %s123, %s71
    %s126 = scalar_lea.vmem %s4, %s125
    %s127 = scalar_lea.sflag [#allocation2], 2
    // Predicated region
    $region25: #{tpu_custom_call.1} parent=5 // pred_check
      _
    $region26: #{tpu_custom_call.1} parent=5 // pred_check_branch
      %129 = sbr.rel target = $region28
    $region27: #{tpu_custom_call.1} parent=5 // pred_region
      %130 = sst [smem:[#allocation8]] [#allocation15]
      %131 = sst [smem:[#allocation9]] [#allocation14]
    $region28: #{tpu_custom_call.1} parent=5 // pred_fallthru
      _
    %133 = shalt.err (0)
    %s135 = sshll.u32 %s124, 4
    %s136 = int_to_ptr.hbm [resolvable:$true] %s135
    %s137 = sshll.u32 %s126, 4
    %s138 = int_to_ptr.vmem [resolvable:$true] %s137
    %140 = dma.hbm_to_vmem [thread:$0]  %s136, 16, %s138, %s127
    %s141 = sadd.s32 %s60, 3
    %s142 = sshra.s32 %s141, 7
    %s143 = sand.u32 %s141, 127
    %s144 = sadd.s32 %s142, %s28
    %s145 = smul.u32 %s144, 128
    %s146 = sshra.s32 %s141, 7
    %s147 = sand.u32 %s141, 127
    %s148 = sadd.s32 %s145, %s147
    %s149 = sld [smem:[#allocation4 + %s148]]
    %s150 = sadd.s32 %s60, 7
    %s151 = scalar_lea.hbm %s3, %s149
    %s152 = sadd.s32 %s150, %s71
    %s153 = scalar_lea.vmem %s4, %s152
    %s154 = scalar_lea.sflag [#allocation2], 3
    // Predicated region
    $region29: #{tpu_custom_call.1} parent=5 // pred_check
      _
    $region30: #{tpu_custom_call.1} parent=5 // pred_check_branch
      %156 = sbr.rel target = $region32
    $region31: #{tpu_custom_call.1} parent=5 // pred_region
      %157 = sst [smem:[#allocation8]] [#allocation17]
      %158 = sst [smem:[#allocation9]] [#allocation16]
    $region32: #{tpu_custom_call.1} parent=5 // pred_fallthru
      _
    %160 = shalt.err (0)
    %s162 = sshll.u32 %s151, 4
    %s163 = int_to_ptr.hbm [resolvable:$true] %s162
    %s164 = sshll.u32 %s153, 4
    %s165 = int_to_ptr.vmem [resolvable:$true] %s164
    %167 = dma.hbm_to_vmem [thread:$0]  %s163, 16, %s165, %s154
    %s168 = smul.u32 1, 1
    %s169 = sshll.u32 %s168, 4
    %170 = dma.done [#allocation2], %s169
    %s171 = sshra.s32 %s69, 7
    %s172 = sand.u32 %s69, 127
    %s173 = sadd.s32 %s171, %s28
    %s174 = smul.u32 %s173, 128
    %s175 = sshra.s32 %s69, 7
    %s176 = sand.u32 %s69, 127
    %s177 = sadd.s32 %s174, %s176
    %s178 = sld [smem:[#allocation4 + %s177]]
    %s179 = sadd.s32 %s60, 8
    %s180 = scalar_lea.hbm %s3, %s178
    %s181 = sadd.s32 %s179, %s71
    %s182 = scalar_lea.vmem %s4, %s181
    // Predicated region
    $region33: #{tpu_custom_call.1} parent=5 // pred_check
      _
    $region34: #{tpu_custom_call.1} parent=5 // pred_check_branch
      %184 = sbr.rel target = $region36
    $region35: #{tpu_custom_call.1} parent=5 // pred_region
      %185 = sst [smem:[#allocation8]] [#allocation19]
      %186 = sst [smem:[#allocation9]] [#allocation18]
    $region36: #{tpu_custom_call.1} parent=5 // pred_fallthru
      _
    %188 = shalt.err (0)
    %s190 = sshll.u32 %s180, 4
    %s191 = int_to_ptr.hbm [resolvable:$true] %s190
    %s192 = sshll.u32 %s182, 4
    %s193 = int_to_ptr.vmem [resolvable:$true] %s192
    %195 = dma.hbm_to_vmem [thread:$0]  %s191, 16, %s193, [#allocation2]
    %s196 = sshll.u32 %s168, 4
    %197 = dma.done %s100, %s196
    %s198 = sshra.s32 %s96, 7
    %s199 = sand.u32 %s96, 127
    %s200 = sadd.s32 %s198, %s28
    %s201 = smul.u32 %s200, 128
    %s202 = sshra.s32 %s96, 7
    %s203 = sand.u32 %s96, 127
    %s204 = sadd.s32 %s201, %s203
    %s205 = sld [smem:[#allocation4 + %s204]]
    %s206 = sadd.s32 %s60, 9
    %s207 = scalar_lea.hbm %s3, %s205
    %s208 = sadd.s32 %s206, %s71
    %s209 = scalar_lea.vmem %s4, %s208
    // Predicated region
    $region37: #{tpu_custom_call.1} parent=5 // pred_check
      _
    $region38: #{tpu_custom_call.1} parent=5 // pred_check_branch
      %211 = sbr.rel target = $region40
    $region39: #{tpu_custom_call.1} parent=5 // pred_region
      %212 = sst [smem:[#allocation8]] [#allocation21]
      %213 = sst [smem:[#allocation9]] [#allocation20]
    $region40: #{tpu_custom_call.1} parent=5 // pred_fallthru
      _
    %215 = shalt.err (0)
    %s217 = sshll.u32 %s207, 4
    %s218 = int_to_ptr.hbm [resolvable:$true] %s217
    %s219 = sshll.u32 %s209, 4
    %s220 = int_to_ptr.vmem [resolvable:$true] %s219
    %222 = dma.hbm_to_vmem [thread:$0]  %s218, 16, %s220, %s100
    %s223 = sshll.u32 %s168, 4
    %224 = dma.done %s127, %s223
    %s225 = sshra.s32 %s123, 7
    %s226 = sand.u32 %s123, 127
    %s227 = sadd.s32 %s225, %s28
    %s228 = smul.u32 %s227, 128
    %s229 = sshra.s32 %s123, 7
    %s230 = sand.u32 %s123, 127
    %s231 = sadd.s32 %s228, %s230
    %s232 = sld [smem:[#allocation4 + %s231]]
    %s233 = sadd.s32 %s60, 10
    %s234 = scalar_lea.hbm %s3, %s232
    %s235 = sadd.s32 %s233, %s71
    %s236 = scalar_lea.vmem %s4, %s235
    // Predicated region
    $region41: #{tpu_custom_call.1} parent=5 // pred_check
      _
    $region42: #{tpu_custom_call.1} parent=5 // pred_check_branch
      %238 = sbr.rel target = $region44
    $region43: #{tpu_custom_call.1} parent=5 // pred_region
      %239 = sst [smem:[#allocation8]] [#allocation23]
      %240 = sst [smem:[#allocation9]] [#allocation22]
    $region44: #{tpu_custom_call.1} parent=5 // pred_fallthru
      _
    %242 = shalt.err (0)
    %s244 = sshll.u32 %s234, 4
    %s245 = int_to_ptr.hbm [resolvable:$true] %s244
    %s246 = sshll.u32 %s236, 4
    %s247 = int_to_ptr.vmem [resolvable:$true] %s246
    %249 = dma.hbm_to_vmem [thread:$0]  %s245, 16, %s247, %s127
    %s250 = sshll.u32 %s168, 4
    %251 = dma.done %s154, %s250
    %s252 = sshra.s32 %s150, 7
    %s253 = sand.u32 %s150, 127
    %s254 = sadd.s32 %s252, %s28
    %s255 = smul.u32 %s254, 128
    %s256 = sshra.s32 %s150, 7
    %s257 = sand.u32 %s150, 127
    %s258 = sadd.s32 %s255, %s257
    %s259 = sld [smem:[#allocation4 + %s258]]
    %s260 = sadd.s32 %s60, 11
    %s261 = scalar_lea.hbm %s3, %s259
    %s262 = sadd.s32 %s260, %s71
    %s263 = scalar_lea.vmem %s4, %s262
    // Predicated region
    $region45: #{tpu_custom_call.1} parent=5 // pred_check
      _
    $region46: #{tpu_custom_call.1} parent=5 // pred_check_branch
      %265 = sbr.rel target = $region48
    $region47: #{tpu_custom_call.1} parent=5 // pred_region
      %266 = sst [smem:[#allocation8]] [#allocation25]
      %267 = sst [smem:[#allocation9]] [#allocation24]
    $region48: #{tpu_custom_call.1} parent=5 // pred_fallthru
      _
    %269 = shalt.err (0)
    %s271 = sshll.u32 %s261, 4
    %s272 = int_to_ptr.hbm [resolvable:$true] %s271
    %s273 = sshll.u32 %s263, 4
    %s274 = int_to_ptr.vmem [resolvable:$true] %s273
    %276 = dma.hbm_to_vmem [thread:$0]  %s272, 16, %s274, %s154
    %s277 = sshll.u32 %s168, 4
    %278 = dma.done [#allocation2], %s277
    %s279 = sshll.u32 %s168, 4
    %280 = dma.done %s100, %s279
    %s281 = sshll.u32 %s168, 4
    %282 = dma.done %s127, %s281
    %s283 = sshll.u32 %s168, 4
    %284 = dma.done %s154, %s283
    // Predicated region
    $region49: #{tpu_custom_call.1} parent=5 // pred_check
      %p285 = pneg %p37
    $region50: #{tpu_custom_call.1} parent=5 // pred_check_branch
      %287 = sbr.rel (%p285) target = $region52
    $region51: #{tpu_custom_call.1} parent=5 // pred_region
      %s288 = sld [smem:[#allocation5 + %s28]]
      %s289 = scalar_lea.sflag [#allocation2], 4
      %s290 = smul.u32 4, 1
      %s291 = sshll.u32 %s290, 4
      %292 = dma.done %s289, %s291
    $region52: #{tpu_custom_call.1} parent=5 // pred_fallthru
      _
  $region6: #{tpu_custom_call.1} parent=0 // loop_footer
    %s27 = sadd.s32 1, %s23
  $region7: #{tpu_custom_call.1} parent=0 // loop_footer_branch
    %22 = sbr.rel target = $region3
  $region8: #{tpu_custom_call.1} parent=0 // loop_exit
    _
  %293 = vsyncmov [#allocation2]
  %s294 = vpop.sfrf %293
  %p295 = scmp.eq.s32.totalorder %s294, 0
  %p296 = pneg %p295
  %298 = shalt.err (%p296)
  %s299 = scalar_lea.sflag [#allocation2], 1
  %300 = vsyncmov %s299
  %s301 = vpop.sfrf %300
  %p302 = scmp.eq.s32.totalorder %s301, 0
  %p303 = pneg %p302
  %305 = shalt.err (%p303)
  %s306 = scalar_lea.sflag [#allocation2], 2
  %307 = vsyncmov %s306
  %s308 = vpop.sfrf %307
  %p309 = scmp.eq.s32.totalorder %s308, 0
  %p310 = pneg %p309
  %312 = shalt.err (%p310)
  %s313 = scalar_lea.sflag [#allocation2], 3
  %314 = vsyncmov %s313
  %s315 = vpop.sfrf %314
  %p316 = scmp.eq.s32.totalorder %s315, 0
  %p317 = pneg %p316
  %319 = shalt.err (%p317)
  %s320 = scalar_lea.sflag [#allocation2], 4
  %321 = vsyncmov %s320
  %s322 = vpop.sfrf %321
  %p323 = scmp.eq.s32.totalorder %s322, 0
  %p324 = pneg %p323
  %326 = shalt.err (%p324)

</llo_original>
